<compile_context>
chip_gen: v7x
topology: tpu7x:2x2x1
jax: 0.10.0
libtpu: 0.0.40
codegen_flags: <defaults>
</compile_context>

<pallas_src>
import functools

import jax
import jax.numpy as jnp
from jax import lax
from jax.experimental import pallas as pl
from jax.experimental.pallas import tpu as pltpu


# --------------------------------------------------------------------------- #
# pltpu.roll shift-convention probe (one tiny kernel, cached).
# We need column q of the rolled array to hold x[(q + off) % n]; depending on
# the convention that is shift = (-off) % n (jnp.roll convention) or off % n.
# --------------------------------------------------------------------------- #
@functools.lru_cache(maxsize=None)
def _roll_sign():
    def k(x_ref, o_ref):
        o_ref[...] = pltpu.roll(x_ref[...], 1, axis=1)

    x = jnp.arange(128, dtype=jnp.float32).reshape(1, 128)
    y = pl.pallas_call(
        k, out_shape=jax.ShapeDtypeStruct((1, 128), jnp.float32))(x)
    # jnp.roll convention: y[0] == x[-1] == 127  ->  use shift = (-off) % n
    return 1 if int(y[0, 0]) == 127 else -1


# -------------------------------- fused kernel ------------------------------ #
def _fused_cnn_kernel(x_ref, w1a, b1a, w1b, b1b, w2a, b2a, w2b, b2b,
                      wfc, bfc, m1, m2, s1, s2,
                      o_ref, p_ref,
                      *, cin, ch, tb, n1p, n2p, wp1, wp2, nflat, rsign):
    nb1 = tb * n1p
    nb2 = tb * n2p

    def shift_for(off, nb):
        # column q of roll(x, shift) must hold x[(q + off) % nb]
        return ((-off) * rsign) % nb

    def conv3x3(x, w, b, mask, cin_l, wp, nb):
        """3x3 'same' conv + bias + ReLU on a padded-flat (cin_l, nb) layout."""
        # Build im2col patches with full-width aligned stores of rolled rows.
        for k in range(9):
            ky, kx = divmod(k, 3)
            off = (ky - 1) * wp + (kx - 1)
            sh = shift_for(off, nb)
            r0, r1 = k * cin_l, (k + 1) * cin_l
            if sh == 0:
                p_ref[r0:r1, 0:nb] = x
            else:
                p_ref[r0:r1, 0:nb] = pltpu.roll(x, sh, axis=1)
        y = jnp.dot(w, p_ref[0:9 * cin_l, 0:nb],
                    preferred_element_type=jnp.float32)
        y = jnp.maximum(y + b, 0.0)
        # Border / lane-pad / cross-image wrap columns -> exact zeros.
        # Keep this a select (not a multiply) so stale values are discarded.
        return jnp.where(mask > 0.5, y, 0.0)

    def pool2x2_max(y, wp, nb):
        """m[q] = max of the 2x2 window anchored at q (valid at window anchors)."""
        m = y
        for off in (1, wp, wp + 1):
            m = jnp.maximum(m, pltpu.roll(y, shift_for(off, nb), axis=1))
        return m

    x0 = x_ref[0]                                   # (cin, nb1), host-zero-padded
    msk1 = m1[...]
    msk2 = m2[...]
    sel1 = s1[...]
    sel2 = s2[...]

    # ---- block 1 ------------------------------------------------------------
    y = conv3x3(x0, w1a[...], b1a[...], msk1, cin, wp1, nb1)
    y = conv3x3(y, w1b[...], b1b[...], msk1, ch, wp1, nb1)
    mp = pool2x2_max(y, wp1, nb1)
    # Per image: pick pooled anchors AND re-pad for block 2 in one matmul.
    x2 = jnp.concatenate(
        [jnp.dot(mp[:, i * n1p:(i + 1) * n1p], sel1,
                 preferred_element_type=jnp.float32) for i in range(tb)],
        axis=1)                                     # (ch, nb2)

    # ---- block 2 ------------------------------------------------------------
    y = conv3x3(x2, w2a[...], b2a[...], msk2, ch, wp2, nb2)
    y = conv3x3(y, w2b[...], b2b[...], msk2, ch, wp2, nb2)
    mp = pool2x2_max(y, wp2, nb2)

    # ---- classifier (flatten order == PyTorch NCHW) --------------------------
    flats = []
    for i in range(tb):
        t = jnp.dot(mp[:, i * n2p:(i + 1) * n2p], sel2,
                    preferred_element_type=jnp.float32)   # (ch, 7*7)
        flats.append(t.reshape(1, ch * nflat))
    feats = jnp.concatenate(flats, axis=0)                # (tb, ch*7*7)
    o_ref[0] = jnp.dot(feats, wfc[...],
                       preferred_element_type=jnp.float32) + bfc[...]


# ----------------------------- host-side helpers ---------------------------- #
def _interior_mask_flat(h, w, npad):
    hp, wp = h + 2, w + 2
    r = jnp.arange(hp)[:, None]
    c = jnp.arange(wp)[None, :]
    m = ((r >= 1) & (r <= h) & (c >= 1) & (c <= w)).astype(jnp.float32)
    return jnp.pad(m.reshape(-1), (0, npad - hp * wp))


def _pool_select(h, w, npad_in, wp_out, npad_out, pad_out):
    """(npad_in, npad_out) 0/1 matrix: output column (py+pad)*wp_out+(px+pad)
    picks the 2x2-window anchor q = (2py+1)*(w+2) + (2px+1)."""
    h2, w2 = h // 2, w // 2
    py, px = jnp.meshgrid(jnp.arange(h2), jnp.arange(w2), indexing="ij")
    q = (2 * py + 1) * (w + 2) + (2 * px + 1)
    r = (py + pad_out) * wp_out + (px + pad_out)
    sel = jnp.zeros((npad_in, npad_out), jnp.float32)
    return sel.at[q.reshape(-1), r.reshape(-1)].set(1.0)


def pack_params(p):
    """One-time weight packing (outside the hot path)."""
    def stack(w):                     # (3,3,cin,cout) -> (cout, 9*cin)
        _, _, cin, cout = w.shape
        return jnp.transpose(w.reshape(9 * cin, cout))
    return {
        "w1a": stack(p["w1a"]), "b1a": p["b1a"].reshape(-1, 1),
        "w1b": stack(p["w1b"]), "b1b": p["b1b"].reshape(-1, 1),
        "w2a": stack(p["w2a"]), "b2a": p["b2a"].reshape(-1, 1),
        "w2b": stack(p["w2b"]), "b2b": p["b2b"].reshape(-1, 1),
        "wfc": p["wfc"], "bfc": p["bfc"].reshape(1, -1),
    }


def cnn_forward(x_nchw, q, tb=8):
    """x_nchw: (B, Cin, H, W) float32 (PyTorch layout); q: pack_params output."""
    B, cin, h, w = x_nchw.shape
    ch = q["w1b"].shape[0]
    out_f = q["wfc"].shape[1]
    assert h % 4 == 0 and w % 4 == 0, "spatial dims must be divisible by 4"
    h2, w2 = h // 2, w // 2
    h4, w4 = h2 // 2, w2 // 2
    wp1, wp2 = w + 2, w2 + 2
    n1, n2 = (h + 2) * wp1, (h2 + 2) * wp2
    n1p = pl.cdiv(n1, 128) * 128          # lane-align each image's flat block
    n2p = pl.cdiv(n2, 128) * 128
    tb = max(1, min(tb, B))
    nsteps = pl.cdiv(B, tb)
    bpad = nsteps * tb
    nb1, nb2 = tb * n1p, tb * n2p

    # ---- host-side input prep: zero-pad, flatten, group TB images per step --
    xp = jnp.pad(x_nchw.astype(jnp.float32),
                 ((0, bpad - B), (0, 0), (1, 1), (1, 1)))
    xp = jnp.pad(xp.reshape(bpad, cin, n1), ((0, 0), (0, 0), (0, n1p - n1)))
    xg = xp.reshape(nsteps, tb, cin, n1p).transpose(0, 2, 1, 3)
    xg = xg.reshape(nsteps, cin, nb1)

    # ---- small constants (folded at compile time under jit) -----------------
    mask1 = jnp.tile(_interior_mask_flat(h, w, n1p), tb)[None, :]
    mask2 = jnp.tile(_interior_mask_flat(h2, w2, n2p), tb)[None, :]
    sel1 = _pool_select(h, w, n1p, wp2, n2p, 1)            # (n1p, n2p)
    sel2 = _pool_select(h2, w2, n2p, w4, h4 * w4, 0)       # (n2p, 49)

    def rep(shape):
        nd = len(shape)
        return pl.BlockSpec(shape, lambda s, nd=nd: (0,) * nd)

    kern = functools.partial(
        _fused_cnn_kernel, cin=cin, ch=ch, tb=tb, n1p=n1p, n2p=n2p,
        wp1=wp1, wp2=wp2, nflat=h4 * w4, rsign=_roll_sign())

    out = pl.pallas_call(
        kern,
        out_shape=jax.ShapeDtypeStruct((nsteps, tb, out_f), jnp.float32),
        grid=(nsteps,),
        in_specs=[
            pl.BlockSpec((1, cin, nb1), lambda s: (s, 0, 0)),
            rep(q["w1a"].shape), rep(q["b1a"].shape),
            rep(q["w1b"].shape), rep(q["b1b"].shape),
            rep(q["w2a"].shape), rep(q["b2a"].shape),
            rep(q["w2b"].shape), rep(q["b2b"].shape),
            rep(q["wfc"].shape), rep(q["bfc"].shape),
            rep(mask1.shape), rep(mask2.shape),
            rep(sel1.shape), rep(sel2.shape),
        ],
        out_specs=pl.BlockSpec((1, tb, out_f), lambda s: (s, 0, 0)),
        scratch_shapes=[
            pltpu.VMEM((9 * max(cin, ch), nb1), jnp.float32),   # im2col patches
        ],
        compiler_params=pltpu.CompilerParams(
            dimension_semantics=("parallel",),
            vmem_limit_bytes=32 * 1024 * 1024),
    )(xg, q["w1a"], q["b1a"], q["w1b"], q["b1b"], q["w2a"], q["b2a"],
      q["w2b"], q["b2b"], q["wfc"], q["bfc"], mask1, mask2, sel1, sel2)
    return out.reshape(bpad, out_f)[:B]


def init_params(key, in_channels, hidden, out_features):
    ks = jax.random.split(key, 10)
    def cw(k, cin, cout):
        return 0.1 * jax.random.normal(k, (3, 3, cin, cout), jnp.float32)
    def cb(k, c):
        return 0.05 * jax.random.normal(k, (c,), jnp.float32)
    return {
        "w1a": cw(ks[0], in_channels, hidden), "b1a": cb(ks[1], hidden),
        "w1b": cw(ks[2], hidden, hidden),      "b1b": cb(ks[3], hidden),
        "w2a": cw(ks[4], hidden, hidden),      "b2a": cb(ks[5], hidden),
        "w2b": cw(ks[6], hidden, hidden),      "b2b": cb(ks[7], hidden),
        "wfc": 0.05 * jax.random.normal(ks[8], (hidden * 7 * 7, out_features),
                                        jnp.float32),
        "bfc": 0.05 * jax.random.normal(ks[9], (out_features,), jnp.float32),
    }


# ---------------------------- pure-JAX reference ---------------------------- #
def ref_forward(x_nchw, p):
    def conv(x, w, b):
        wt = jnp.transpose(w, (3, 2, 0, 1))                      # -> OIHW
        y = lax.conv_general_dilated(x, wt, (1, 1), ((1, 1), (1, 1)),
                                     dimension_numbers=("NCHW", "OIHW", "NCHW"))
        return y + b[None, :, None, None]
    def pool(x):
        return lax.reduce_window(x, -jnp.inf, lax.max,
                                 (1, 1, 2, 2), (1, 1, 2, 2), "VALID")
    x = jnp.maximum(conv(x_nchw, p["w1a"], p["b1a"]), 0.0)
    x = jnp.maximum(conv(x, p["w1b"], p["b1b"]), 0.0)
    x = pool(x)
    x = jnp.maximum(conv(x, p["w2a"], p["b2a"]), 0.0)
    x = jnp.maximum(conv(x, p["w2b"], p["b2b"]), 0.0)
    x = pool(x)
    x = x.reshape(x.shape[0], -1)
    return x @ p["wfc"] + p["bfc"]


if __name__ == "__main__":
    key = jax.random.PRNGKey(0)
    k_x, k_p = jax.random.split(key)

    B, IN_C, H, W = 16, 1, 28, 28       # 28x28 required by hidden*7*7 classifier
    HIDDEN, OUT, TB = 8, 10, 8          # TB images per grid step -> grid=(2,)

    x = jax.random.normal(k_x, (B, IN_C, H, W), jnp.float32)     # NCHW like PyTorch
    params = init_params(k_p, IN_C, HIDDEN, OUT)
    packed = pack_params(params)        # one-time weight packing (not per call)

    _roll_sign()                        # warm the roll-convention probe (cached)

    fwd = jax.jit(functools.partial(cnn_forward, tb=TB))
    out = jax.block_until_ready(fwd(x, packed))

    ref = jax.block_until_ready(ref_forward(x, params))
    assert out.shape == (B, OUT), out.shape
    assert jnp.allclose(out, ref, atol=5e-2, rtol=5e-2), \
        f"max abs diff {float(jnp.max(jnp.abs(out - ref)))}"

    print("KERNEL_OK")
</pallas_src>

<mosaic_0001>
module attributes {stable_mosaic.version = 11 : i64} {
  func.func @k(%arg0: memref<1x128xf32, #tpu.memory_space<vmem>>, %arg1: memref<1x128xf32, #tpu.memory_space<vmem>>) attributes {dimension_semantics = [], scalar_prefetch = 0 : i64, scratch_operands = 0 : i64, tpu.core_type = #tpu.core_type<tc>} {
    %c0 = arith.constant 0 : index
    %c0_0 = arith.constant 0 : index
    %0 = vector.load %arg0[%c0, %c0_0] : memref<1x128xf32, #tpu.memory_space<vmem>>, vector<1x128xf32>
    %c1_i32 = arith.constant 1 : i32
    %1 = tpu.dynamic_rotate %0 by %c1_i32 dim 1 : vector<1x128xf32>, i32 -> vector<1x128xf32>
    %c0_1 = arith.constant 0 : index
    %c0_2 = arith.constant 0 : index
    %2 = vector.load %arg1[%c0_1, %c0_2] : memref<1x128xf32, #tpu.memory_space<vmem>>, vector<1x128xf32>
    tpu.vector_store %arg1[%c0_1, %c0_2], %1 {strides = array<i32>} : memref<1x128xf32, #tpu.memory_space<vmem>>, vector<1x128xf32>,
    return
  }
}

</mosaic_0001>

<llo_original>
// kernel: tpu_custom_call.1
$region0: #{tpu_custom_call.1}
  #allocation0 [shape = 'u32[]', space=smem, size = 0x4, offset = 0x4, fixed_abs, tag = 'smem constant byte address 0x4 - core index']
  #allocation1 [shape = 'u32[144,128]{1,0:T(1,128)}', space=vmem, size = 0x12000, scoped, tag = 'internal scratch']
  %s0 = inlined_call_operand.hbm [shape: f32[1,128], index: 0, kind: input, shape index: {}]
  %s1 = inlined_call_operand.hbm [shape: f32[1,128], index: 1, kind: output, shape index: {}]
  %s2 = sld [smem:[#allocation0]]
  $region18: #{tpu_custom_call.1} parent=0
    _
  %s4 = ssub.s32 1, %s2
  %s5 = scalar_select 0, %s4, %s2
  $region1: #{tpu_custom_call.1} parent=0
    #allocation2 [shape = 'u8[512]{0}', space=vmem, size = 0x400, scoped, tag = 'input window, operand 0, single buffered']
    #allocation3 [shape = 's32[1]{0}', space=sflag, size = 0x4, scoped, tag = 'scoped memory for tpu_custom_call.1']
    #allocation4 [shape = 's32[1]{0}', space=sflag, size = 0x4, scoped, tag = 'scoped memory for tpu_custom_call.1']
    #allocation5 [shape = 'u8[512]{0}', space=vmem, size = 0x400, scoped, tag = 'output window, operand 0, single buffered']
    %6 = vsyncpa [#allocation3], 0
    %7 = vsyncpa [#allocation4], 0
    // Predicated region
    $region2: #{tpu_custom_call.1} parent=1 // pred_check
      _
    $region3: #{tpu_custom_call.1} parent=1 // pred_check_branch
      %9 = sbr.rel (0) target = $region5
    $region4: #{tpu_custom_call.1} parent=1 // pred_region
      %s11 = ssub.s32 16, 16
      %12 = vsyncadd [#allocation3], %s11
      %s14 = sshll.u32 [#allocation2], 4
      %s15 = int_to_ptr.vmem [resolvable:$true] %s14
      %17 = dma.hbm_to_vmem [thread:$0]  %s0, 16, %s15, [#allocation3]
    $region5: #{tpu_custom_call.1} parent=1 // pred_fallthru
      _
    // Predicated region
    $region6: #{tpu_custom_call.1} parent=1 // pred_check
      _
    $region7: #{tpu_custom_call.1} parent=1 // pred_check_branch
      %19 = sbr.rel (0) target = $region9
    $region8: #{tpu_custom_call.1} parent=1 // pred_region
      %20 = dma.done [#allocation3], 16
    $region9: #{tpu_custom_call.1} parent=1 // pred_fallthru
      _
    %v21 = vld [vmem:[#allocation2] sm:$0x1]
    %22 = vrot.lane.b32.xlu0 %v21, 1
    %v23 = vpop.permute.xlu0 %22
    %24 = vst [vmem:[#allocation5] sm:$0x1] %v23
    // Predicated region
    $region10: #{tpu_custom_call.1} parent=1 // pred_check
      _
    $region11: #{tpu_custom_call.1} parent=1 // pred_check_branch
      %26 = sbr.rel (0) target = $region13
    $region12: #{tpu_custom_call.1} parent=1 // pred_region
      %s28 = ssub.s32 16, 16
      %29 = vsyncadd [#allocation4], %s28
      %s31 = sshll.u32 [#allocation5], 4
      %s32 = int_to_ptr.vmem [resolvable:$true] %s31
      %34 = dma.vmem_to_hbm [thread:$0]  %s32, 16, %s1, [#allocation4]
    $region13: #{tpu_custom_call.1} parent=1 // pred_fallthru
      _
    // Predicated region
    $region14: #{tpu_custom_call.1} parent=1 // pred_check
      _
    $region15: #{tpu_custom_call.1} parent=1 // pred_check_branch
      %36 = sbr.rel (0) target = $region17
    $region16: #{tpu_custom_call.1} parent=1 // pred_region
      %37 = dma.done [#allocation4], 16
    $region17: #{tpu_custom_call.1} parent=1 // pred_fallthru
      _
    %38 = vsyncpa [#allocation3], 1
    %39 = vsyncpa [#allocation4], 1

</llo_original>
